<compile_context>
chip_gen: v7x
topology: tpu7x:2x2x1
jax: 0.10.0
libtpu: 0.0.40
codegen_flags: <defaults>
</compile_context>

<pallas_src>
import functools

import jax
import jax.numpy as jnp
from jax.experimental import pallas as pl
from jax.experimental.pallas import tpu as pltpu


def _sinkhorn_kernel(logits_ref, out_ref, *, num_iters, inv_epsilon, batch,
                     num_protos):
    # Single f32 cast at load (all intermediates stay f32; no bf16 VPU/EUP on
    # v5e), and multiply by the static 1/epsilon instead of dividing.
    x = logits_ref[...].astype(jnp.float32) * jnp.float32(inv_epsilon)

    # Stabilize exp: subtract the global max.  exp(x - m) = exp(x) * exp(-m);
    # the constant exp(-m) (and the original Q /= sum(Q)) is exactly absorbed
    # by the first per-prototype normalization below.
    out_ref[...] = jnp.exp(x - jnp.max(x))

    inv_k = jnp.float32(1.0 / num_protos)
    inv_b = jnp.float32(1.0 / batch)
    zero = jnp.float32(0.0)

    for it in range(num_iters):
        # ---- Q /= sum(Q, dim=1, keepdim=True); Q /= K ----------------------
        # (per-prototype sums over the batch axis)
        p = out_ref[...]
        s_col = jnp.sum(p, axis=0, keepdims=True)                  # (1, Kpad)
        # Reciprocal-multiply: one small (1,K) reciprocal + a (B,K) multiply
        # instead of a (B,K) divide; the 1/K pass is folded in; padded
        # (zero-sum) prototype columns are masked so they stay exactly zero.
        inv_col = jnp.where(s_col > zero, 1.0 / s_col, zero) * inv_k
        out_ref[...] = p * inv_col

        # ---- Q /= sum(Q, dim=0, keepdim=True); Q /= B ----------------------
        # (per-sample sums over the prototype axis)
        # TODO(synk): if the cross-lane axis=1 reduction ever binds on the XLU
        # (large K on v6e/v7x), move it to the MXU via
        # jnp.dot(p, ones((Kpad, 1)), precision=HIGHEST).
        p = out_ref[...]
        s_row = jnp.sum(p, axis=1, keepdims=True)                  # (Bpad, 1)
        inv_row = jnp.where(s_row > zero, 1.0 / s_row, zero)
        if it != num_iters - 1:
            # On the last iteration the /B cancels the trailing *B exactly, so
            # both passes are deleted; earlier iterations fold 1/B here.
            inv_row = inv_row * inv_b
        out_ref[...] = p * inv_row


def sinkhorn_knopp(logits, queue=None, use_gt=False, *, num_iters=3,
                   epsilon=0.05):
    """Pallas TPU equivalent of SinkhornKnopp.forward (use_gt=False path)."""
    if use_gt:
        # TODO(synk): use_gt branch multiplies by a hard-coded 4-prototype
        # prior [[0.6, 0.2, 0.15, 0.05]] instead of /K; not implemented here.
        raise NotImplementedError("use_gt=True path not implemented")

    b, k = logits.shape
    # Lane/sublane-dense padding: K (lanes) -> multiple of 128, B (sublanes) ->
    # multiple of 8.  Padded logits are -inf so exp() == 0 and all sums are
    # unchanged; the kernel masks the resulting zero-sum rows/columns.
    bp = int(pl.cdiv(b, 8)) * 8
    kp = int(pl.cdiv(k, 128)) * 128
    if (bp, kp) != (b, k):
        padded = jnp.full((bp, kp), -jnp.inf, dtype=logits.dtype)
        padded = padded.at[:b, :k].set(logits)
    else:
        padded = logits

    tile_bytes = bp * kp * 4
    # Single-buffered input tile + output tile + headroom; stays under v7x's
    # 64 MiB per-core VMEM and above v5e's 16 MiB scoped default when needed.
    vmem_limit = int(min(64 * 1024 * 1024,
                         max(16 * 1024 * 1024, 4 * tile_bytes)))

    kernel = functools.partial(
        _sinkhorn_kernel,
        num_iters=num_iters,
        inv_epsilon=1.0 / epsilon,
        batch=b,
        num_protos=k,
    )

    out = pl.pallas_call(
        kernel,
        out_shape=jax.ShapeDtypeStruct((bp, kp), jnp.float32),
        # No grid -> a single kernel invocation with the whole (padded) problem
        # resident in VMEM and no double-buffering overhead.
        in_specs=[pl.BlockSpec(memory_space=pltpu.MemorySpace.VMEM)],
        out_specs=pl.BlockSpec(memory_space=pltpu.MemorySpace.VMEM),
        compiler_params=pltpu.CompilerParams(vmem_limit_bytes=vmem_limit),
    )(padded)

    out = out[:b, :k]
    # Matches `Q.t()` (no queue) or `Q.t()[:-queue.shape[0]]` (with queue).
    if queue is not None:
        out = out[: -queue.shape[0]]
    return out


if __name__ == "__main__":
    key = jax.random.PRNGKey(0)
    B, K = 8, 32  # small shapes: 8 samples, 32 prototypes (padded to (8, 128))
    logits = jax.random.normal(key, (B, K), dtype=jnp.float32)

    result = jax.block_until_ready(
        sinkhorn_knopp(logits, num_iters=3, epsilon=0.05))

    # Pure-JAX f32 reference mirroring the original PyTorch op sequence.
    def ref(lg, num_iters=3, epsilon=0.05):
        q = jnp.exp(lg.astype(jnp.float32) / epsilon).T  # (K, B)
        kk, bb = q.shape
        q = q / jnp.sum(q)
        for _ in range(num_iters):
            q = q / jnp.sum(q, axis=1, keepdims=True)
            q = q / kk
            q = q / jnp.sum(q, axis=0, keepdims=True)
            q = q / bb
        return (q * bb).T

    expected = ref(logits)
    assert result.shape == (B, K)
    assert bool(jnp.all(jnp.isfinite(result)))
    assert jnp.allclose(result, expected, rtol=5e-4, atol=1e-6), float(
        jnp.max(jnp.abs(result - expected)))
    # Each sample's assignment distribution (row of Q.t()) sums to 1.
    assert jnp.allclose(result.sum(axis=1), 1.0, rtol=1e-4, atol=1e-5)
    print("KERNEL_OK")
</pallas_src>

<mosaic_0001>
module attributes {stable_mosaic.version = 11 : i64} {
  func.func @_sinkhorn_kernel(%arg0: memref<8x128xf32, #tpu.memory_space<vmem>>, %arg1: memref<8x128xf32, #tpu.memory_space<vmem>>) attributes {dimension_semantics = [], scalar_prefetch = 0 : i64, scratch_operands = 0 : i64, tpu.core_type = #tpu.core_type<tc>} {
    %c0 = arith.constant 0 : index
    %c0_0 = arith.constant 0 : index
    %0 = vector.load %arg0[%c0, %c0_0] : memref<8x128xf32, #tpu.memory_space<vmem>>, vector<8x128xf32>
    %cst = arith.constant 2.000000e+01 : f32
    %1 = vector.broadcast %cst : f32 to vector<8x128xf32>
    %2 = arith.mulf %0, %1 : vector<8x128xf32>
    %3 = vector.shape_cast %2 : vector<8x128xf32> to vector<1x8x128xf32>
    %cst_1 = arith.constant dense<0xFF800000> : vector<1xf32>
    %4 = vector.multi_reduction <maximumf>, %3, %cst_1 [1, 2] : vector<1x8x128xf32> to vector<1xf32>
    %5 = vector.shape_cast %4 : vector<1xf32> to vector<1x1x1xf32>
    %6 = vector.extract %5[0, 0, 0] : f32 from vector<1x1x1xf32>
    %7 = vector.broadcast %6 : f32 to vector<8x128xf32>
    %8 = arith.subf %2, %7 : vector<8x128xf32>
    %9 = math.exp %8 : vector<8x128xf32>
    %c0_2 = arith.constant 0 : index
    %c0_3 = arith.constant 0 : index
    %10 = vector.load %arg1[%c0_2, %c0_3] : memref<8x128xf32, #tpu.memory_space<vmem>>, vector<8x128xf32>
    tpu.vector_store %arg1[%c0_2, %c0_3], %9 {strides = array<i32>} : memref<8x128xf32, #tpu.memory_space<vmem>>, vector<8x128xf32>,
    %c0_4 = arith.constant 0 : index
    %c0_5 = arith.constant 0 : index
    %11 = vector.load %arg1[%c0_4, %c0_5] : memref<8x128xf32, #tpu.memory_space<vmem>>, vector<8x128xf32>
    %cst_6 = arith.constant dense<0.000000e+00> : vector<128xf32>
    %12 = vector.multi_reduction <add>, %11, %cst_6 [0] : vector<8x128xf32> to vector<128xf32>
    %13 = vector.shape_cast %12 : vector<128xf32> to vector<1x128xf32>
    %cst_7 = arith.constant 0.000000e+00 : f32
    %14 = vector.broadcast %cst_7 : f32 to vector<1x128xf32>
    %15 = arith.cmpf ogt, %13, %14 : vector<1x128xf32>
    %cst_8 = arith.constant 1.000000e+00 : f32
    %16 = vector.broadcast %cst_8 : f32 to vector<1x128xf32>
    %17 = arith.divf %16, %13 : vector<1x128xf32>
    %cst_9 = arith.constant 0.000000e+00 : f32
    %18 = vector.broadcast %cst_9 : f32 to vector<1x128xf32>
    %19 = arith.select %15, %17, %18 : vector<1x128xi1>, vector<1x128xf32>
    %cst_10 = arith.constant 3.125000e-02 : f32
    %20 = vector.broadcast %cst_10 : f32 to vector<1x128xf32>
    %21 = arith.mulf %19, %20 : vector<1x128xf32>
    %22 = vector.broadcast %21 : vector<1x128xf32> to vector<8x128xf32>
    %23 = arith.mulf %11, %22 : vector<8x128xf32>
    %c0_11 = arith.constant 0 : index
    %c0_12 = arith.constant 0 : index
    %24 = vector.load %arg1[%c0_11, %c0_12] : memref<8x128xf32, #tpu.memory_space<vmem>>, vector<8x128xf32>
    tpu.vector_store %arg1[%c0_11, %c0_12], %23 {strides = array<i32>} : memref<8x128xf32, #tpu.memory_space<vmem>>, vector<8x128xf32>,
    %c0_13 = arith.constant 0 : index
    %c0_14 = arith.constant 0 : index
    %25 = vector.load %arg1[%c0_13, %c0_14] : memref<8x128xf32, #tpu.memory_space<vmem>>, vector<8x128xf32>
    %cst_15 = arith.constant dense<0.000000e+00> : vector<8xf32>
    %26 = vector.multi_reduction <add>, %25, %cst_15 [1] : vector<8x128xf32> to vector<8xf32>
    %27 = vector.shape_cast %26 : vector<8xf32> to vector<8x1xf32>
    %cst_16 = arith.constant 0.000000e+00 : f32
    %28 = vector.broadcast %cst_16 : f32 to vector<8x1xf32>
    %29 = arith.cmpf ogt, %27, %28 : vector<8x1xf32>
    %cst_17 = arith.constant 1.000000e+00 : f32
    %30 = vector.broadcast %cst_17 : f32 to vector<8x1xf32>
    %31 = arith.divf %30, %27 : vector<8x1xf32>
    %cst_18 = arith.constant 0.000000e+00 : f32
    %32 = vector.broadcast %cst_18 : f32 to vector<8x1xf32>
    %33 = arith.select %29, %31, %32 : vector<8x1xi1>, vector<8x1xf32>
    %cst_19 = arith.constant 1.250000e-01 : f32
    %34 = vector.broadcast %cst_19 : f32 to vector<8x1xf32>
    %35 = arith.mulf %33, %34 : vector<8x1xf32>
    %36 = vector.broadcast %35 : vector<8x1xf32> to vector<8x128xf32>
    %37 = arith.mulf %25, %36 : vector<8x128xf32>
    %c0_20 = arith.constant 0 : index
    %c0_21 = arith.constant 0 : index
    %38 = vector.load %arg1[%c0_20, %c0_21] : memref<8x128xf32, #tpu.memory_space<vmem>>, vector<8x128xf32>
    tpu.vector_store %arg1[%c0_20, %c0_21], %37 {strides = array<i32>} : memref<8x128xf32, #tpu.memory_space<vmem>>, vector<8x128xf32>,
    %c0_22 = arith.constant 0 : index
    %c0_23 = arith.constant 0 : index
    %39 = vector.load %arg1[%c0_22, %c0_23] : memref<8x128xf32, #tpu.memory_space<vmem>>, vector<8x128xf32>
    %cst_24 = arith.constant dense<0.000000e+00> : vector<128xf32>
    %40 = vector.multi_reduction <add>, %39, %cst_24 [0] : vector<8x128xf32> to vector<128xf32>
    %41 = vector.shape_cast %40 : vector<128xf32> to vector<1x128xf32>
    %cst_25 = arith.constant 0.000000e+00 : f32
    %42 = vector.broadcast %cst_25 : f32 to vector<1x128xf32>
    %43 = arith.cmpf ogt, %41, %42 : vector<1x128xf32>
    %cst_26 = arith.constant 1.000000e+00 : f32
    %44 = vector.broadcast %cst_26 : f32 to vector<1x128xf32>
    %45 = arith.divf %44, %41 : vector<1x128xf32>
    %cst_27 = arith.constant 0.000000e+00 : f32
    %46 = vector.broadcast %cst_27 : f32 to vector<1x128xf32>
    %47 = arith.select %43, %45, %46 : vector<1x128xi1>, vector<1x128xf32>
    %cst_28 = arith.constant 3.125000e-02 : f32
    %48 = vector.broadcast %cst_28 : f32 to vector<1x128xf32>
    %49 = arith.mulf %47, %48 : vector<1x128xf32>
    %50 = vector.broadcast %49 : vector<1x128xf32> to vector<8x128xf32>
    %51 = arith.mulf %39, %50 : vector<8x128xf32>
    %c0_29 = arith.constant 0 : index
    %c0_30 = arith.constant 0 : index
    %52 = vector.load %arg1[%c0_29, %c0_30] : memref<8x128xf32, #tpu.memory_space<vmem>>, vector<8x128xf32>
    tpu.vector_store %arg1[%c0_29, %c0_30], %51 {strides = array<i32>} : memref<8x128xf32, #tpu.memory_space<vmem>>, vector<8x128xf32>,
    %c0_31 = arith.constant 0 : index
    %c0_32 = arith.constant 0 : index
    %53 = vector.load %arg1[%c0_31, %c0_32] : memref<8x128xf32, #tpu.memory_space<vmem>>, vector<8x128xf32>
    %cst_33 = arith.constant dense<0.000000e+00> : vector<8xf32>
    %54 = vector.multi_reduction <add>, %53, %cst_33 [1] : vector<8x128xf32> to vector<8xf32>
    %55 = vector.shape_cast %54 : vector<8xf32> to vector<8x1xf32>
    %cst_34 = arith.constant 0.000000e+00 : f32
    %56 = vector.broadcast %cst_34 : f32 to vector<8x1xf32>
    %57 = arith.cmpf ogt, %55, %56 : vector<8x1xf32>
    %cst_35 = arith.constant 1.000000e+00 : f32
    %58 = vector.broadcast %cst_35 : f32 to vector<8x1xf32>
    %59 = arith.divf %58, %55 : vector<8x1xf32>
    %cst_36 = arith.constant 0.000000e+00 : f32
    %60 = vector.broadcast %cst_36 : f32 to vector<8x1xf32>
    %61 = arith.select %57, %59, %60 : vector<8x1xi1>, vector<8x1xf32>
    %cst_37 = arith.constant 1.250000e-01 : f32
    %62 = vector.broadcast %cst_37 : f32 to vector<8x1xf32>
    %63 = arith.mulf %61, %62 : vector<8x1xf32>
    %64 = vector.broadcast %63 : vector<8x1xf32> to vector<8x128xf32>
    %65 = arith.mulf %53, %64 : vector<8x128xf32>
    %c0_38 = arith.constant 0 : index
    %c0_39 = arith.constant 0 : index
    %66 = vector.load %arg1[%c0_38, %c0_39] : memref<8x128xf32, #tpu.memory_space<vmem>>, vector<8x128xf32>
    tpu.vector_store %arg1[%c0_38, %c0_39], %65 {strides = array<i32>} : memref<8x128xf32, #tpu.memory_space<vmem>>, vector<8x128xf32>,
    %c0_40 = arith.constant 0 : index
    %c0_41 = arith.constant 0 : index
    %67 = vector.load %arg1[%c0_40, %c0_41] : memref<8x128xf32, #tpu.memory_space<vmem>>, vector<8x128xf32>
    %cst_42 = arith.constant dense<0.000000e+00> : vector<128xf32>
    %68 = vector.multi_reduction <add>, %67, %cst_42 [0] : vector<8x128xf32> to vector<128xf32>
    %69 = vector.shape_cast %68 : vector<128xf32> to vector<1x128xf32>
    %cst_43 = arith.constant 0.000000e+00 : f32
    %70 = vector.broadcast %cst_43 : f32 to vector<1x128xf32>
    %71 = arith.cmpf ogt, %69, %70 : vector<1x128xf32>
    %cst_44 = arith.constant 1.000000e+00 : f32
    %72 = vector.broadcast %cst_44 : f32 to vector<1x128xf32>
    %73 = arith.divf %72, %69 : vector<1x128xf32>
    %cst_45 = arith.constant 0.000000e+00 : f32
    %74 = vector.broadcast %cst_45 : f32 to vector<1x128xf32>
    %75 = arith.select %71, %73, %74 : vector<1x128xi1>, vector<1x128xf32>
    %cst_46 = arith.constant 3.125000e-02 : f32
    %76 = vector.broadcast %cst_46 : f32 to vector<1x128xf32>
    %77 = arith.mulf %75, %76 : vector<1x128xf32>
    %78 = vector.broadcast %77 : vector<1x128xf32> to vector<8x128xf32>
    %79 = arith.mulf %67, %78 : vector<8x128xf32>
    %c0_47 = arith.constant 0 : index
    %c0_48 = arith.constant 0 : index
    %80 = vector.load %arg1[%c0_47, %c0_48] : memref<8x128xf32, #tpu.memory_space<vmem>>, vector<8x128xf32>
    tpu.vector_store %arg1[%c0_47, %c0_48], %79 {strides = array<i32>} : memref<8x128xf32, #tpu.memory_space<vmem>>, vector<8x128xf32>,
    %c0_49 = arith.constant 0 : index
    %c0_50 = arith.constant 0 : index
    %81 = vector.load %arg1[%c0_49, %c0_50] : memref<8x128xf32, #tpu.memory_space<vmem>>, vector<8x128xf32>
    %cst_51 = arith.constant dense<0.000000e+00> : vector<8xf32>
    %82 = vector.multi_reduction <add>, %81, %cst_51 [1] : vector<8x128xf32> to vector<8xf32>
    %83 = vector.shape_cast %82 : vector<8xf32> to vector<8x1xf32>
    %cst_52 = arith.constant 0.000000e+00 : f32
    %84 = vector.broadcast %cst_52 : f32 to vector<8x1xf32>
    %85 = arith.cmpf ogt, %83, %84 : vector<8x1xf32>
    %cst_53 = arith.constant 1.000000e+00 : f32
    %86 = vector.broadcast %cst_53 : f32 to vector<8x1xf32>
    %87 = arith.divf %86, %83 : vector<8x1xf32>
    %cst_54 = arith.constant 0.000000e+00 : f32
    %88 = vector.broadcast %cst_54 : f32 to vector<8x1xf32>
    %89 = arith.select %85, %87, %88 : vector<8x1xi1>, vector<8x1xf32>
    %90 = vector.broadcast %89 : vector<8x1xf32> to vector<8x128xf32>
    %91 = arith.mulf %81, %90 : vector<8x128xf32>
    %c0_55 = arith.constant 0 : index
    %c0_56 = arith.constant 0 : index
    %92 = vector.load %arg1[%c0_55, %c0_56] : memref<8x128xf32, #tpu.memory_space<vmem>>, vector<8x128xf32>
    tpu.vector_store %arg1[%c0_55, %c0_56], %91 {strides = array<i32>} : memref<8x128xf32, #tpu.memory_space<vmem>>, vector<8x128xf32>,
    return
  }
}

</mosaic_0001>

<llo_original>
// kernel: tpu_custom_call.1
$region0: #{tpu_custom_call.1}
  #allocation0 [shape = 'u32[]', space=smem, size = 0x4, offset = 0x4, fixed_abs, tag = 'smem constant byte address 0x4 - core index']
  #allocation1 [shape = 'u32[144,128]{1,0:T(1,128)}', space=vmem, size = 0x12000, scoped, tag = 'internal scratch']
  %s0 = inlined_call_operand.hbm [shape: f32[8,128], index: 0, kind: input, shape index: {}]
  %s1 = inlined_call_operand.hbm [shape: f32[8,128], index: 1, kind: output, shape index: {}]
  %s2 = sld [smem:[#allocation0]]
  $region18: #{tpu_custom_call.1} parent=0
    _
  %s4 = ssub.s32 1, %s2
  %s5 = scalar_select 0, %s4, %s2
  $region1: #{tpu_custom_call.1} parent=0
    #allocation2 [shape = 'u8[4096]{0}', space=vmem, size = 0x1000, scoped, tag = 'input window, operand 0, single buffered']
    #allocation3 [shape = 's32[1]{0}', space=sflag, size = 0x4, scoped, tag = 'scoped memory for tpu_custom_call.1']
    #allocation4 [shape = 's32[1]{0}', space=sflag, size = 0x4, scoped, tag = 'scoped memory for tpu_custom_call.1']
    #allocation5 [shape = 'u8[4096]{0}', space=vmem, size = 0x1000, scoped, tag = 'output window, operand 0, single buffered']
    %6 = vsyncpa [#allocation3], 0
    %7 = vsyncpa [#allocation4], 0
    // Predicated region
    $region2: #{tpu_custom_call.1} parent=1 // pred_check
      _
    $region3: #{tpu_custom_call.1} parent=1 // pred_check_branch
      %9 = sbr.rel (0) target = $region5
    $region4: #{tpu_custom_call.1} parent=1 // pred_region
      %s11 = ssub.s32 128, 128
      %12 = vsyncadd [#allocation3], %s11
      %s14 = sshll.u32 [#allocation2], 4
      %s15 = int_to_ptr.vmem [resolvable:$true] %s14
      %17 = dma.hbm_to_vmem [thread:$0]  %s0, 128, %s15, [#allocation3]
    $region5: #{tpu_custom_call.1} parent=1 // pred_fallthru
      _
    // Predicated region
    $region6: #{tpu_custom_call.1} parent=1 // pred_check
      _
    $region7: #{tpu_custom_call.1} parent=1 // pred_check_branch
      %19 = sbr.rel (0) target = $region9
    $region8: #{tpu_custom_call.1} parent=1 // pred_region
      %20 = dma.done [#allocation3], 128
    $region9: #{tpu_custom_call.1} parent=1 // pred_fallthru
      _
    %v21 = vld [vmem:[#allocation2] sm:$0xff]
    %v22 = vmul.f32 %v21, 20.0
    %23 = vmax.xlane.f32.xlu0 %v22
    %v24 = vpop.xlane.xlu0 %23
    %v25 = vrot.slane %v24, 4
    %v26 = vmax.f32 %v24, %v25
    %v27 = vrot.slane %v26, 2
    %v28 = vmax.f32 %v26, %v27
    %v29 = vrot.slane %v28, 1
    %v30 = vmax.f32 %v28, %v29
    %s31 = vtos %v30
    %v32 = vstv %s31
    %v33 = vsub.f32 %v22, %v32
    %v34 = vmul.f32 %v33, 1.442695
    %v35 = vpow.pop %v34
    %36 = vst [vmem:[#allocation5] sm:$0xff] %v35
    %v37 = vld [vmem:[#allocation5] sm:$0xff]
    %v38 = vrot.slane %v37, 4
    %v39 = vadd.f32 %v37, %v38
    %v40 = vrot.slane %v39, 2
    %v41 = vadd.f32 %v39, %v40
    %v42 = vrot.slane %v41, 1
    %v43 = vadd.f32 %v41, %v42
    %vm44 = vcmp.gt.f32.partialorder %v43, 0.0
    %v45 = vrcp.pop %v43
    %v46 = vmul.f32 1.0, %v45
    %v47 = vsel %vm44, %v46, 0.0
    %v48 = vmul.f32 %v47, 0.03125
    %v49 = vmul.f32 %v37, %v48
    %50 = vst [vmem:[#allocation5] sm:$0xff] %v49
    %v51 = vld [vmem:[#allocation5] sm:$0xff]
    %52 = vadd.xlane.f32.xlu0 %v51
    %v53 = vpop.xlane.xlu0 %52
    %vm54 = vcmp.gt.f32.partialorder %v53, 0.0
    %v55 = vrcp.pop %v53
    %v56 = vmul.f32 1.0, %v55
    %v57 = vsel %vm54, %v56, 0.0
    %v58 = vmul.f32 %v57, 0.125
    %v59 = vmul.f32 %v51, %v58
    %60 = vst [vmem:[#allocation5] sm:$0xff] %v59
    %v61 = vld [vmem:[#allocation5] sm:$0xff]
    %v62 = vrot.slane %v61, 4
    %v63 = vadd.f32 %v61, %v62
    %v64 = vrot.slane %v63, 2
    %v65 = vadd.f32 %v63, %v64
    %v66 = vrot.slane %v65, 1
    %v67 = vadd.f32 %v65, %v66
    %vm68 = vcmp.gt.f32.partialorder %v67, 0.0
    %v69 = vrcp.pop %v67
    %v70 = vmul.f32 1.0, %v69
    %v71 = vsel %vm68, %v70, 0.0
    %v72 = vmul.f32 %v71, 0.03125
    %v73 = vmul.f32 %v61, %v72
    %74 = vst [vmem:[#allocation5] sm:$0xff] %v73
    %v75 = vld [vmem:[#allocation5] sm:$0xff]
    %76 = vadd.xlane.f32.xlu0 %v75
    %v77 = vpop.xlane.xlu0 %76
    %vm78 = vcmp.gt.f32.partialorder %v77, 0.0
    %v79 = vrcp.pop %v77
    %v80 = vmul.f32 1.0, %v79
    %v81 = vsel %vm78, %v80, 0.0
    %v82 = vmul.f32 %v81, 0.125
    %v83 = vmul.f32 %v75, %v82
    %84 = vst [vmem:[#allocation5] sm:$0xff] %v83
    %v85 = vld [vmem:[#allocation5] sm:$0xff]
    %v86 = vrot.slane %v85, 4
    %v87 = vadd.f32 %v85, %v86
    %v88 = vrot.slane %v87, 2
    %v89 = vadd.f32 %v87, %v88
    %v90 = vrot.slane %v89, 1
    %v91 = vadd.f32 %v89, %v90
    %vm92 = vcmp.gt.f32.partialorder %v91, 0.0
    %v93 = vrcp.pop %v91
    %v94 = vmul.f32 1.0, %v93
    %v95 = vsel %vm92, %v94, 0.0
    %v96 = vmul.f32 %v95, 0.03125
    %v97 = vmul.f32 %v85, %v96
    %98 = vst [vmem:[#allocation5] sm:$0xff] %v97
    %v99 = vld [vmem:[#allocation5] sm:$0xff]
    %100 = vadd.xlane.f32.xlu0 %v99
    %v101 = vpop.xlane.xlu0 %100
    %vm102 = vcmp.gt.f32.partialorder %v101, 0.0
    %v103 = vrcp.pop %v101
    %v104 = vmul.f32 1.0, %v103
    %v105 = vsel %vm102, %v104, 0.0
    %v106 = vmul.f32 %v99, %v105
    %107 = vst [vmem:[#allocation5] sm:$0xff] %v106
    // Predicated region
    $region10: #{tpu_custom_call.1} parent=1 // pred_check
      _
    $region11: #{tpu_custom_call.1} parent=1 // pred_check_branch
      %109 = sbr.rel (0) target = $region13
    $region12: #{tpu_custom_call.1} parent=1 // pred_region
      %s111 = ssub.s32 128, 128
      %112 = vsyncadd [#allocation4], %s111
      %s114 = sshll.u32 [#allocation5], 4
      %s115 = int_to_ptr.vmem [resolvable:$true] %s114
      %117 = dma.vmem_to_hbm [thread:$0]  %s115, 128, %s1, [#allocation4]
    $region13: #{tpu_custom_call.1} parent=1 // pred_fallthru
      _
    // Predicated region
    $region14: #{tpu_custom_call.1} parent=1 // pred_check
      _
    $region15: #{tpu_custom_call.1} parent=1 // pred_check_branch
      %119 = sbr.rel (0) target = $region17
    $region16: #{tpu_custom_call.1} parent=1 // pred_region
      %120 = dma.done [#allocation4], 128
    $region17: #{tpu_custom_call.1} parent=1 // pred_fallthru
      _
    %121 = vsyncpa [#allocation3], 1
    %122 = vsyncpa [#allocation4], 1

</llo_original>
